<compile_context>
chip_gen: v7x
topology: tpu7x:2x2x1
jax: 0.10.0
libtpu: 0.0.40
codegen_flags: <defaults>
</compile_context>

<pallas_src>
import functools

import jax
import jax.numpy as jnp
from jax import lax
from jax.experimental import pallas as pl
from jax.experimental.pallas import tpu as pltpu

_LANE = 128
_NEG_BIG = -1e30          # plain Python float: never captured as a jax constant


def _round_up(x, m):
    return ((x + m - 1) // m) * m


def _row_tile(n, feature_dim, c_pad, x_itemsize):
    """Largest row tile (multiple of 8) whose per-step VMEM working set fits a
    conservative budget (v5e's 16 MiB scoped default is the binding limit;
    keeps v7x's 32 MiB default comfortable)."""
    budget = 12 * 1024 * 1024
    resident = 2 * feature_dim * c_pad * x_itemsize + 4 * c_pad * 4  # wt(2buf)+b+cw
    per_row = (2 * feature_dim * x_itemsize     # x double buffer
               + 2 * c_pad * 4                  # f32 logits / softmax temporaries
               + 2 * _LANE * 4                  # label block (lane-padded) on loss path
               + 2 * c_pad * 4)                 # worst-case output tile
    avail = max(budget - resident, 64 * 1024)
    tn = max(8, min(1024, (avail // per_row) // 8 * 8))
    n8 = _round_up(max(n, 1), 8)
    tn = min(tn, n8)
    if n8 > 8:
        # keep >= 2 row tiles so the "parallel" axis can shard across both
        # v7x TensorCores
        tn = min(tn, _round_up((n + 1) // 2, 8))
    return max(8, tn)


def _logits(x_ref, wt_ref, b_ref):
    # x and wt stay in the input's native (possibly bf16) dtype -> full MXU
    # rate; accumulate in f32.  Bias is f32; padded class lanes carry -1e30,
    # which masks them for max / exp / logsumexp with zero in-kernel cost.
    logits = jnp.dot(x_ref[...], wt_ref[...], preferred_element_type=jnp.float32)
    return logits + b_ref[...]


def _pred_kernel(x_ref, wt_ref, b_ref, pred_ref, *, class_num):
    # argmax straight from logits (softmax is monotone): no exp / divide,
    # lane-dense (1, 1, tn) int32 store.
    logits = _logits(x_ref, wt_ref, b_ref)                     # (tn, c_pad) f32
    tn, c_pad = logits.shape
    col = lax.broadcasted_iota(jnp.int32, (1, c_pad), 1)
    m = jnp.max(logits, axis=-1, keepdims=True)
    hit = (logits == m) & (col < class_num)                    # exclude padded lanes
    idx = jnp.min(jnp.where(hit, col, c_pad), axis=-1)         # lowest-index tie-break
    pred_ref[...] = idx.reshape(1, 1, tn)


def _proba_kernel(x_ref, wt_ref, b_ref, probs_ref, *, class_num):
    logits = _logits(x_ref, wt_ref, b_ref)                     # padded lanes ~ -1e30
    m = jnp.max(logits, axis=-1, keepdims=True)
    e = jnp.exp(logits - m)                                    # padded lanes underflow to 0
    s = jnp.sum(e, axis=-1, keepdims=True)
    p = e / s
    # store only the real classes, in the input dtype (shrinks the writeback;
    # removes the wrapper column-slice pass)
    probs_ref[...] = p[:, :class_num].astype(probs_ref.dtype)


def _loss_kernel(x_ref, y_ref, wt_ref, b_ref, cw_ref, num_ref, den_ref, *,
                 total_rows, tile_rows):
    logits = _logits(x_ref, wt_ref, b_ref)                     # (tn, c_pad) f32
    tn, c_pad = logits.shape
    col = lax.broadcasted_iota(jnp.int32, (1, c_pad), 1)
    m = jnp.max(logits, axis=-1, keepdims=True)
    e = jnp.exp(logits - m)
    s = jnp.sum(e, axis=-1, keepdims=True)

    # mask rows of the ragged last tile (no host-side padding pass)
    row = lax.broadcasted_iota(jnp.int32, (tn, 1), 0) + pl.program_id(0) * tile_rows
    row_ok = row < total_rows                                  # (tn, 1) bool

    y = y_ref[...]                                             # (tn, 1) int32
    onehot = (col == y).astype(jnp.float32)                    # never hits padded lanes
    w_i = jnp.sum(onehot * cw_ref[...], axis=-1, keepdims=True)
    logit_y = jnp.sum(onehot * logits, axis=-1, keepdims=True)
    nll_i = m + jnp.log(s) - logit_y                           # per-row CE

    num_t = jnp.sum(jnp.where(row_ok, w_i * nll_i, 0.0), axis=0, keepdims=True)
    den_t = jnp.sum(jnp.where(row_ok, w_i, 0.0), axis=0, keepdims=True)
    # lane-dense per-tile partial slabs -> grid axis stays "parallel"
    num_ref[...] = jnp.broadcast_to(num_t, num_ref.shape)
    den_ref[...] = jnp.broadcast_to(den_t, den_ref.shape)


def logistic_classifier_forward(pair_representation, W, b,
                                pair_label=None, return_proba=False,
                                class_weight=None):
    """Mirrors LogisticClassifier.forward (eval-mode dropout = identity)."""
    class_num, feature_dim = W.shape
    c_pad = _round_up(class_num, _LANE)

    xf = pair_representation.reshape(-1, feature_dim)          # native dtype, no pad
    n = xf.shape[0]
    x_dtype = xf.dtype
    x_item = jnp.dtype(x_dtype).itemsize
    tn = _row_tile(n, feature_dim, c_pad, x_item)
    num_tiles = (n + tn - 1) // tn                             # ragged last tile ok

    # MXU operands in the input's (low) precision; zero-padded class columns.
    wt = jnp.zeros((feature_dim, c_pad), x_dtype).at[:, :class_num].set(
        W.astype(x_dtype).T)
    # padded class lanes get a huge negative bias => masked "for free"
    bp = jnp.full((1, c_pad), _NEG_BIG, jnp.float32).at[:, :class_num].set(
        b.astype(jnp.float32))

    x_spec = pl.BlockSpec((tn, feature_dim), lambda i: (i, 0))
    wt_spec = pl.BlockSpec((feature_dim, c_pad), lambda i: (0, 0))   # VMEM-resident
    b_spec = pl.BlockSpec((1, c_pad), lambda i: (0, 0))              # VMEM-resident

    est_vmem = (2 * tn * feature_dim * x_item            # x double buffer
                + 2 * feature_dim * c_pad * x_item       # resident weights (2 bufs)
                + 2 * tn * c_pad * 4                     # f32 temporaries / outputs
                + 2 * tn * _LANE * 4                     # lane-padded label block
                + 4 * c_pad * 4)
    params = pltpu.CompilerParams(
        dimension_semantics=("parallel",),
        vmem_limit_bytes=int(min(64 << 20, max(32 << 20, 2 * est_vmem))))

    in_bytes = n * feature_dim * x_item + feature_dim * c_pad * x_item + c_pad * 4
    matmul_flops = 2 * num_tiles * tn * feature_dim * c_pad

    if pair_label is not None:
        y = pair_label.reshape(-1, 1).astype(jnp.int32)
        cw_valid = (jnp.ones((class_num,), jnp.float32) if class_weight is None
                    else class_weight.astype(jnp.float32))
        cw = jnp.zeros((1, c_pad), jnp.float32).at[:, :class_num].set(cw_valid)

        kernel = functools.partial(_loss_kernel, total_rows=n, tile_rows=tn)
        num_p, den_p = pl.pallas_call(
            kernel,
            out_shape=(
                jax.ShapeDtypeStruct((1, _LANE * num_tiles), jnp.float32),
                jax.ShapeDtypeStruct((1, _LANE * num_tiles), jnp.float32),
            ),
            grid_spec=pltpu.PrefetchScalarGridSpec(
                num_scalar_prefetch=0,
                grid=(num_tiles,),
                in_specs=[
                    x_spec,
                    pl.BlockSpec((tn, 1), lambda i: (i, 0)),   # lane-padded in VMEM (documented cost)
                    wt_spec, b_spec,
                    pl.BlockSpec((1, c_pad), lambda i: (0, 0)),
                ],
                out_specs=[
                    pl.BlockSpec((1, _LANE), lambda i: (0, i)),
                    pl.BlockSpec((1, _LANE), lambda i: (0, i)),
                ],
            ),
            compiler_params=params,
            cost_estimate=pl.CostEstimate(
                flops=matmul_flops,
                transcendentals=num_tiles * tn * c_pad,
                bytes_accessed=in_bytes + n * 4 + c_pad * 4
                + 2 * _LANE * num_tiles * 4),
        )(xf, y, wt, bp, cw)
        num = jnp.sum(num_p.reshape(num_tiles, _LANE)[:, 0])
        den = jnp.sum(den_p.reshape(num_tiles, _LANE)[:, 0])
        return num / den

    if return_proba:
        kernel = functools.partial(_proba_kernel, class_num=class_num)
        probs = pl.pallas_call(
            kernel,
            out_shape=jax.ShapeDtypeStruct((n, class_num), x_dtype),
            grid_spec=pltpu.PrefetchScalarGridSpec(
                num_scalar_prefetch=0,
                grid=(num_tiles,),
                in_specs=[x_spec, wt_spec, b_spec],
                out_specs=pl.BlockSpec((tn, class_num), lambda i: (i, 0)),
            ),
            compiler_params=params,
            cost_estimate=pl.CostEstimate(
                flops=matmul_flops,
                transcendentals=num_tiles * tn * c_pad,
                bytes_accessed=in_bytes + n * class_num * x_item),
        )(xf, wt, bp)
        return probs

    kernel = functools.partial(_pred_kernel, class_num=class_num)
    pred = pl.pallas_call(
        kernel,
        out_shape=jax.ShapeDtypeStruct((num_tiles, 1, tn), jnp.int32),
        grid_spec=pltpu.PrefetchScalarGridSpec(
            num_scalar_prefetch=0,
            grid=(num_tiles,),
            in_specs=[x_spec, wt_spec, b_spec],
            out_specs=pl.BlockSpec((1, 1, tn), lambda i: (i, 0, 0)),
        ),
        compiler_params=params,
        cost_estimate=pl.CostEstimate(
            flops=matmul_flops,
            transcendentals=0,
            bytes_accessed=in_bytes + num_tiles * tn * 4),
    )(xf, wt, bp)
    return pred.reshape(num_tiles * tn)[:n]


if __name__ == "__main__":
    key = jax.random.PRNGKey(0)
    # seq=9 makes n=18: exercises the ragged last tile + >=2-tile parallel grid
    batch, seq, feature_dim, class_num = 2, 9, 32, 2

    k_x, k_w, k_b, k_y = jax.random.split(key, 4)
    x = jax.random.normal(k_x, (batch, seq, feature_dim), dtype=jnp.float32)

    # deterministic Linear init (torch default: U(-1/sqrt(D), 1/sqrt(D)))
    bound = 1.0 / (feature_dim ** 0.5)
    W = jax.random.uniform(k_w, (class_num, feature_dim),
                           minval=-bound, maxval=bound, dtype=jnp.float32)
    b = jax.random.uniform(k_b, (class_num,),
                           minval=-bound, maxval=bound, dtype=jnp.float32)
    labels = jax.random.randint(k_y, (batch, seq), 0, class_num, dtype=jnp.int32)
    class_weight = jnp.array([1.0, 2.0], dtype=jnp.float32)

    # mode 1: inference -> argmax labels
    preds = logistic_classifier_forward(x, W, b)
    # mode 2: inference -> softmax probabilities
    probs = logistic_classifier_forward(x, W, b, return_proba=True)
    # mode 3: training -> weighted / unweighted cross-entropy loss
    loss_w = logistic_classifier_forward(x, W, b, pair_label=labels,
                                         class_weight=class_weight)
    loss_u = logistic_classifier_forward(x, W, b, pair_label=labels)

    jax.block_until_ready((preds, probs, loss_w, loss_u))

    # sanity check against plain-JAX reference
    logits_ref = x.reshape(-1, feature_dim) @ W.T + b
    probs_ref = jax.nn.softmax(logits_ref, axis=-1)
    preds_ref = jnp.argmax(probs_ref, axis=-1)
    lp = jax.nn.log_softmax(logits_ref, axis=-1)
    yf = labels.reshape(-1)
    nll = -lp[jnp.arange(yf.shape[0]), yf]
    w_i = class_weight[yf]
    loss_w_ref = jnp.sum(w_i * nll) / jnp.sum(w_i)
    loss_u_ref = jnp.mean(nll)

    assert probs.shape == (batch * seq, class_num)
    assert jnp.allclose(probs, probs_ref, atol=1e-5)
    assert jnp.array_equal(preds, preds_ref.astype(jnp.int32))
    assert jnp.allclose(loss_w, loss_w_ref, atol=1e-5)
    assert jnp.allclose(loss_u, loss_u_ref, atol=1e-5)

    print("KERNEL_OK")
</pallas_src>

<mosaic_0001>
module attributes {stable_mosaic.version = 11 : i64} {
  func.func @_pred_kernel(%arg0: i32, %arg1: memref<16x32xf32, #tpu.memory_space<vmem>>, %arg2: memref<32x128xf32, #tpu.memory_space<vmem>>, %arg3: memref<1x128xf32, #tpu.memory_space<vmem>>, %arg4: memref<1x1x16xi32, #tpu.memory_space<vmem>>) attributes {dimension_semantics = [#tpu.dimension_semantics<parallel>], iteration_bounds = array<i64: 2>, scalar_prefetch = 0 : i64, scratch_operands = 0 : i64, tpu.core_type = #tpu.core_type<tc>, window_params = [{transform_indices = @transform_0, window_bounds = array<i64: 16, 32>}, {pipeline_mode = #tpu.pipeline_mode<synchronous>, transform_indices = @transform_1, window_bounds = array<i64: 32, 128>}, {pipeline_mode = #tpu.pipeline_mode<synchronous>, transform_indices = @transform_2, window_bounds = array<i64: 1, 128>}, {transform_indices = @transform_3, window_bounds = array<i64: 1, 1, 16>}]} {
    %c0 = arith.constant 0 : index
    %c0_0 = arith.constant 0 : index
    %0 = vector.load %arg1[%c0, %c0_0] : memref<16x32xf32, #tpu.memory_space<vmem>>, vector<16x32xf32>
    %c0_1 = arith.constant 0 : index
    %c0_2 = arith.constant 0 : index
    %1 = vector.load %arg2[%c0_1, %c0_2] : memref<32x128xf32, #tpu.memory_space<vmem>>, vector<32x128xf32>
    %cst = arith.constant dense<0.000000e+00> : vector<16x128xf32>
    %2 = tpu.matmul %0, %1, %cst {dimension_numbers = #tpu.dot_dimension_numbers<[1], [0], [0], [1], [0, 0, 1, 1], [], []>} : vector<16x32xf32>, vector<32x128xf32>, vector<16x128xf32> -> vector<16x128xf32>
    %c0_3 = arith.constant 0 : index
    %c0_4 = arith.constant 0 : index
    %3 = vector.load %arg3[%c0_3, %c0_4] : memref<1x128xf32, #tpu.memory_space<vmem>>, vector<1x128xf32>
    %4 = vector.broadcast %3 : vector<1x128xf32> to vector<16x128xf32>
    %5 = arith.addf %2, %4 : vector<16x128xf32>
    %6 = tpu.iota {dimensions = array<i32: 1>} : vector<1x128xi32>
    %cst_5 = arith.constant dense<0xFF800000> : vector<16xf32>
    %7 = vector.multi_reduction <maximumf>, %5, %cst_5 [1] : vector<16x128xf32> to vector<16xf32>
    %8 = vector.shape_cast %7 : vector<16xf32> to vector<16x1xf32>
    %9 = vector.broadcast %8 : vector<16x1xf32> to vector<16x128xf32>
    %10 = arith.cmpf oeq, %5, %9 : vector<16x128xf32>
    %c2_i32 = arith.constant 2 : i32
    %11 = vector.broadcast %c2_i32 : i32 to vector<1x128xi32>
    %12 = arith.cmpi slt, %6, %11 : vector<1x128xi32>
    %13 = vector.broadcast %12 : vector<1x128xi1> to vector<16x128xi1>
    %14 = arith.andi %10, %13 : vector<16x128xi1>
    %c128_i32 = arith.constant 128 : i32
    %15 = vector.shape_cast %6 : vector<1x128xi32> to vector<1x128xi32>
    %16 = vector.broadcast %15 : vector<1x128xi32> to vector<16x128xi32>
    %17 = vector.broadcast %c128_i32 : i32 to vector<16x128xi32>
    %18 = arith.select %14, %16, %17 : vector<16x128xi1>, vector<16x128xi32>
    %cst_6 = arith.constant dense<2147483647> : vector<16xi32>
    %19 = vector.multi_reduction <minsi>, %18, %cst_6 [1] : vector<16x128xi32> to vector<16xi32>
    %20 = vector.shape_cast %19 : vector<16xi32> to vector<1x1x16xi32>
    %c0_7 = arith.constant 0 : index
    %c0_8 = arith.constant 0 : index
    %c0_9 = arith.constant 0 : index
    %21 = vector.load %arg4[%c0_7, %c0_8, %c0_9] : memref<1x1x16xi32, #tpu.memory_space<vmem>>, vector<1x1x16xi32>
    tpu.vector_store %arg4[%c0_7, %c0_8, %c0_9], %20 {strides = array<i32>} : memref<1x1x16xi32, #tpu.memory_space<vmem>>, vector<1x1x16xi32>,
    return
  }
  func.func @transform_0(%arg0: i32) -> (i32, i32) {
    %c0_i32 = arith.constant 0 : i32
    %c0_i32_0 = arith.constant 0 : i32
    return %arg0, %c0_i32 : i32, i32
  }
  func.func @transform_1(%arg0: i32) -> (i32, i32) {
    %c0_i32 = arith.constant 0 : i32
    %c0_i32_0 = arith.constant 0 : i32
    %c0_i32_1 = arith.constant 0 : i32
    return %c0_i32, %c0_i32_0 : i32, i32
  }
  func.func @transform_2(%arg0: i32) -> (i32, i32) {
    %c0_i32 = arith.constant 0 : i32
    %c0_i32_0 = arith.constant 0 : i32
    %c0_i32_1 = arith.constant 0 : i32
    return %c0_i32, %c0_i32_0 : i32, i32
  }
  func.func @transform_3(%arg0: i32) -> (i32, i32, i32) {
    %c0_i32 = arith.constant 0 : i32
    %c0_i32_0 = arith.constant 0 : i32
    %c0_i32_1 = arith.constant 0 : i32
    return %arg0, %c0_i32, %c0_i32_0 : i32, i32, i32
  }
}

</mosaic_0001>

<llo_original>
// kernel: tpu_custom_call.1
$region0: #{tpu_custom_call.1}
  #allocation0 [shape = 'u32[]', space=smem, size = 0x4, offset = 0x4, fixed_abs, tag = 'smem constant byte address 0x4 - core index']
  #allocation1 [shape = 'u32[144,128]{1,0:T(1,128)}', space=vmem, size = 0x12000, scoped, tag = 'internal scratch']
  %s0 = inlined_call_operand.hbm [shape: f32[18,32], index: 0, kind: input, shape index: {}]
  %s1 = inlined_call_operand.hbm [shape: f32[32,128], index: 1, kind: input, shape index: {}]
  %s2 = inlined_call_operand.vmem [shape: f32[1,128], index: 2, kind: input, shape index: {}]
  %s3 = inlined_call_operand.hbm [shape: s32[2,1,16], index: 3, kind: output, shape index: {}]
  %s4 = sld [smem:[#allocation0]]
  $region53: #{tpu_custom_call.1} parent=0
    _
  %s6 = ssub.s32 1, %s4
  %s7 = scalar_select 0, %s6, %s4
  $region1: #{tpu_custom_call.1} parent=0
    #allocation2 [shape = 'u8[16384]{0}', space=vmem, size = 0x4000, scoped, tag = 'input window, operand 0']
    #allocation3 [shape = 's32[2]{0}', space=sflag, size = 0x8, scoped, tag = 'scoped memory for tpu_custom_call.1']
    #allocation4 [shape = 's32[2]{0}', space=sflag, size = 0x8, scoped, tag = 'scoped memory for tpu_custom_call.1']
    #allocation5 [shape = 'u8[16384]{0}', space=vmem, size = 0x4000, scoped, tag = 'input window, operand 1, single buffered']
    #allocation6 [shape = 's32[1]{0}', space=sflag, size = 0x4, scoped, tag = 'scoped memory for tpu_custom_call.1']
    #allocation7 [shape = 'u8[1024]{0}', space=vmem, size = 0x400, scoped, tag = 'output window, operand 0']
    %8 = vsyncpa [#allocation3], 0
    %s9 = scalar_lea.sflag [#allocation3], 1
    %10 = vsyncpa %s9, 0
    %11 = vsyncpa [#allocation6], 0
    %12 = vsyncpa [#allocation4], 0
    %s13 = scalar_lea.sflag [#allocation4], 1
    %14 = vsyncpa %s13, 0
    loop: start=0, step=1, limit=4
    $region2: #{tpu_custom_call.1} parent=1 // loop_pre_header
      _
    $region3: #{tpu_custom_call.1} parent=1 // loop_header
      %s16 = sphi 0, %s20
      %p17 = scmp.ge.s32.totalorder %s16, 4
      %s26 = sphi 0, %s28
      %s29 = sphi 0, %s26
      %s30 = sphi 0, %s29
      %s46 = sphi 0, %s30
      %s50 = sphi 0, %s50
      %s52 = sphi 0, %s50
      %s53 = sphi 0, %s52
      %s67 = sphi 0, %s53
      %s71 = sphi 0, %s71
      %s73 = sphi 0, %s71
      %s74 = sphi 0, %s73
      %s88 = sphi 0, %s74
      %s94 = sphi 0, %s96
      %s97 = sphi 0, %s94
      %s98 = sphi 0, %s97
      %s114 = sphi 0, %s98
    $region4: #{tpu_custom_call.1} parent=1 // loop_header_branch
      %19 = sbr.rel (%p17) target = $region8
    $region5: #{tpu_custom_call.1} parent=1 // loop_body
      %s21 = ssub.s32 %s16, 1
      %s22 = ssub.s32 %s16, 2
      %s23 = sadd.s32 %s16, 1
      %s24 = ssub.s32 %s16, %s23
      %p25 = scmp.eq.s32.totalorder %s24, 0
      %s27 = sadd.s32 %s26, 1
      %s28 = scalar_select %p25, %s26, %s27
      %p31 = pneg %p25
      %p32 = scmp.eq.s32.totalorder %s16, 1
      %p33 = por %p31, %p32
      %p34 = scmp.ne.s32.totalorder %s26, %s29
      %p35 = scmp.eq.s32.totalorder %s16, 0
      %p36 = por %p34, %p35
      %p37 = scmp.ne.s32.totalorder %s26, %s29
      %p38 = scmp.eq.s32.totalorder %s21, 1
      %p39 = por %p37, %p38
      %p40 = scmp.ne.s32.totalorder %s29, %s30
      %p41 = scmp.eq.s32.totalorder %s21, 0
      %p42 = por %p40, %p41
      %p43 = scmp.ne.s32.totalorder %s29, %s30
      %p44 = scmp.eq.s32.totalorder %s22, 1
      %p45 = por %p43, %p44
      %p47 = scmp.ne.s32.totalorder %s30, %s46
      %p48 = scmp.eq.s32.totalorder %s22, 0
      %p49 = por %p47, %p48
      %s51 = sadd.s32 %s50, 1
      %p54 = scmp.eq.s32.totalorder %s16, 1
      %p55 = scmp.ne.s32.totalorder %s50, %s52
      %p56 = scmp.eq.s32.totalorder %s16, 0
      %p57 = por %p55, %p56
      %p58 = scmp.ne.s32.totalorder %s50, %s52
      %p59 = scmp.eq.s32.totalorder %s21, 1
      %p60 = por %p58, %p59
      %p61 = scmp.ne.s32.totalorder %s52, %s53
      %p62 = scmp.eq.s32.totalorder %s21, 0
      %p63 = por %p61, %p62
      %p64 = scmp.ne.s32.totalorder %s52, %s53
      %p65 = scmp.eq.s32.totalorder %s22, 1
      %p66 = por %p64, %p65
      %p68 = scmp.ne.s32.totalorder %s53, %s67
      %p69 = scmp.eq.s32.totalorder %s22, 0
      %p70 = por %p68, %p69
      %s72 = sadd.s32 %s71, 1
      %p75 = scmp.eq.s32.totalorder %s16, 1
      %p76 = scmp.ne.s32.totalorder %s71, %s73
      %p77 = scmp.eq.s32.totalorder %s16, 0
      %p78 = por %p76, %p77
      %p79 = scmp.ne.s32.totalorder %s71, %s73
      %p80 = scmp.eq.s32.totalorder %s21, 1
      %p81 = por %p79, %p80
      %p82 = scmp.ne.s32.totalorder %s73, %s74
      %p83 = scmp.eq.s32.totalorder %s21, 0
      %p84 = por %p82, %p83
      %p85 = scmp.ne.s32.totalorder %s73, %s74
      %p86 = scmp.eq.s32.totalorder %s22, 1
      %p87 = por %p85, %p86
      %p89 = scmp.ne.s32.totalorder %s74, %s88
      %p90 = scmp.eq.s32.totalorder %s22, 0
      %p91 = por %p89, %p90
      %s92 = ssub.s32 %s16, %s23
      %p93 = scmp.eq.s32.totalorder %s92, 0
      %s95 = sadd.s32 %s94, 1
      %s96 = scalar_select %p93, %s94, %s95
      %p99 = pneg %p93
      %p100 = scmp.eq.s32.totalorder %s16, 1
      %p101 = por %p99, %p100
      %p102 = scmp.ne.s32.totalorder %s94, %s97
      %p103 = scmp.eq.s32.totalorder %s16, 0
      %p104 = por %p102, %p103
      %p105 = scmp.ne.s32.totalorder %s94, %s97
      %p106 = scmp.eq.s32.totalorder %s21, 1
      %p107 = por %p105, %p106
      %p108 = scmp.ne.s32.totalorder %s97, %s98
      %p109 = scmp.eq.s32.totalorder %s21, 0
      %p110 = por %p108, %p109
      %p111 = scmp.ne.s32.totalorder %s97, %s98
      %p112 = scmp.eq.s32.totalorder %s22, 1
      %p113 = por %p111, %p112
      %p115 = scmp.ne.s32.totalorder %s98, %s114
      %p116 = scmp.eq.s32.totalorder %s22, 0
      %p117 = por %p115, %p116
      %p118 = scmp.le.s32.totalorder 1, %s16
      %p119 = scmp.lt.s32.totalorder %s16, 3
      %p120 = pnand %p118, %p119
      %p121 = pneg %p120
      // Predicated region
      $region9: #{tpu_custom_call.1} parent=5 // pred_check
        _
      $region10: #{tpu_custom_call.1} parent=5 // pred_check_branch
        %123 = sbr.rel (%p120) target = $region12
      $region11: #{tpu_custom_call.1} parent=5 // pred_region
        %s124 = ssub.s32 %s16, 1
        // Predicated region
        $region13: #{tpu_custom_call.1} parent=11 // pred_check
          %p125 = pneg %p63
        $region14: #{tpu_custom_call.1} parent=11 // pred_check_branch
          %127 = sbr.rel (%p125) target = $region16
        $region15: #{tpu_custom_call.1} parent=11 // pred_region
          %s129 = ssub.s32 512, 512
          %130 = vsyncadd [#allocation6], %s129
          %s131 = sshll.u32 [#allocation5], 4
          %s132 = int_to_ptr.vmem [resolvable:$true] %s131
          %137 = dma.hbm_to_vmem [thread:$0]  %s1, 512, %s132, [#allocation6], 128, 128, 8
        $region16: #{tpu_custom_call.1} parent=11 // pred_fallthru
          _
        // Predicated region
        $region17: #{tpu_custom_call.1} parent=11 // pred_check
          %p138 = pneg %p84
        $region18: #{tpu_custom_call.1} parent=11 // pred_check_branch
          %140 = sbr.rel (%p138) target = $region20
        $region19: #{tpu_custom_call.1} parent=11 // pred_region
          _
        $region20: #{tpu_custom_call.1} parent=11 // pred_fallthru
          _
      $region12: #{tpu_custom_call.1} parent=5 // pred_fallthru
        _
      %p141 = scmp.lt.s32.totalorder %s16, 2
      // Predicated region
      $region21: #{tpu_custom_call.1} parent=5 // pred_check
        %p142 = pneg %p141
      $region22: #{tpu_custom_call.1} parent=5 // pred_check_branch
        %144 = sbr.rel (%p142) target = $region24
      $region23: #{tpu_custom_call.1} parent=5 // pred_region
        // Predicated region
        $region25: #{tpu_custom_call.1} parent=23 // pred_check
          %p145 = pneg %p36
        $region26: #{tpu_custom_call.1} parent=23 // pred_check_branch
          %147 = sbr.rel (%p145) target = $region28
        $region27: #{tpu_custom_call.1} parent=23 // pred_region
          %s148 = sand.u32 %s26, 1
          %s149 = scalar_lea.sflag [#allocation3], %s148
          %s150 = sand.u32 %s26, 1
          %s151 = smul.addr %s150, 16
          %s152 = scalar_lea.vmem [#allocation2], %s151
          %s153 = smul.u32 2, %s16
          %s154 = ssub.s32 3, %s153
          %p155 = scmp.lt.s32.totalorder %s154, 2
          %s156 = scalar_select %p155, %s154, 2
          %s157 = smul.u32 128, %s156
          %s159 = ssub.s32 256, %s157
          %160 = vsyncadd %s149, %s159
          %p161 = scmp.ne.s32.totalorder 0, %s157
          %s162 = smul.addr %s153, 128
          %s163 = scalar_lea.hbm %s0, %s162
          %s164 = smul.u32 8, %s156
          %s165 = sshll.u32 %s152, 4
          %s166 = int_to_ptr.vmem [resolvable:$true] %s165
          %s167 = sshll.u32 %s164, 4
          %171 = dma.hbm_to_vmem [thread:$0]  (%p161), %s163, %s167, %s166, %s149, 128, 128, 8
        $region28: #{tpu_custom_call.1} parent=23 // pred_fallthru
          _
      $region24: #{tpu_custom_call.1} parent=5 // pred_fallthru
        _
      %p172 = scmp.le.s32.totalorder 1, %s16
      %p173 = scmp.lt.s32.totalorder %s16, 3
      %p174 = pnand %p172, %p173
      %p175 = pneg %p174
      // Predicated region
      $region29: #{tpu_custom_call.1} parent=5 // pred_check
        _
      $region30: #{tpu_custom_call.1} parent=5 // pred_check_branch
        %177 = sbr.rel (%p174) target = $region32
      $region31: #{tpu_custom_call.1} parent=5 // pred_region
        %s178 = ssub.s32 %s16, 1
        %s179 = sand.u32 %s29, 1
        %s180 = scalar_lea.sflag [#allocation3], %s179
        %s181 = sand.u32 %s29, 1
        %s182 = smul.addr %s181, 16
        %s183 = scalar_lea.vmem [#allocation2], %s182
        // Predicated region
        $region33: #{tpu_custom_call.1} parent=31 // pred_check
          %p184 = pneg %p42
        $region34: #{tpu_custom_call.1} parent=31 // pred_check_branch
          %186 = sbr.rel (%p184) target = $region36
        $region35: #{tpu_custom_call.1} parent=31 // pred_region
          %187 = dma.done %s180, 256
        $region36: #{tpu_custom_call.1} parent=31 // pred_fallthru
          _
        // Predicated region
        $region37: #{tpu_custom_call.1} parent=31 // pred_check
          %p188 = pneg %p63
        $region38: #{tpu_custom_call.1} parent=31 // pred_check_branch
          %190 = sbr.rel (%p188) target = $region40
        $region39: #{tpu_custom_call.1} parent=31 // pred_region
          %191 = dma.done [#allocation6], 512
        $region40: #{tpu_custom_call.1} parent=31 // pred_fallthru
          _
        %s192 = sand.u32 %s29, 1
        %s193 = scalar_lea.sflag [#allocation3], %s192
        %s194 = sand.u32 %s29, 1
        %s195 = smul.addr %s194, 16
        %s196 = scalar_lea.vmem [#allocation2], %s195
        %p197 = pneg %p42
        %p198 = pneg %p39
        %p199 = pneg %p63
        %p200 = pneg %p60
        %p201 = pneg %p84
        %p202 = pneg %p81
        %p203 = pneg %p110
        %p204 = pneg %p107
        %s205 = sand.u32 %s97, 1
        %s206 = scalar_lea.sflag [#allocation4], %s205
        %s207 = sand.u32 %s97, 1
        %s208 = scalar_lea.vmem [#allocation7], %s207
        %s209 = smul.u32 2, %s21
        %s210 = ssub.s32 3, %s209
        %p211 = scmp.lt.s32.totalorder %s210, 2
        %s212 = scalar_select %p211, %s210, 2
        %s213 = smul.u32 128, %s212
        %v214 = vld [vmem:[%s183] sm:$0xff]
        %v215 = vld [vmem:[%s183 + $0x8] sm:$0xff]
        %v216 = vld [vmem:[#allocation5] sm:$0xff]
        %v217 = vld [vmem:[#allocation5 + $0x8] sm:$0xff]
        %v218 = vld [vmem:[#allocation5 + $0x10] sm:$0xff]
        %v219 = vld [vmem:[#allocation5 + $0x18] sm:$0xff]
        %v220 = vld [vmem:[%s2] sm:$0x1]
        %v222 = vlaneseq
        %v223 = vshrl.u32 %v222, 7
        %v224 = vsub.s32 0, %v223
        %v225 = vrot.slane %v220, %v224
        %vm227 = vcmask 261120
        %v229 = vsel %vm227, %v214, 0
        %v232 = vsel %vm227, %v215, 0
        %234 = vmatprep.subr.mxu0 0.0
        %235 = vmatpush1.msra.mxu0 %v216
        %236 = vmatprep.subr.mxu0 0.0
        %237 = vmatpush1.msra.mxu0 %v217
        %238 = vmatprep.subr.mxu0 0.0
        %239 = vmatpush1.msra.mxu0 %v218
        %240 = vmatprep.subr.mxu0 0.0
        %241 = vmatpush1.msra.mxu0 %v219
        %242 = vmatprep.subr.mxu0 0.0
        %243 = vmatpush1.msra.mxu0 0.0
        %244 = vmatprep.subr.mxu0 0.0
        %245 = vmatpush1.msra.mxu0 0.0
        %246 = vmatprep.subr.mxu0 0.0
        %247 = vmatpush1.msra.mxu0 0.0
        %248 = vmatprep.subr.mxu0 0.0
        %249 = vmatpush1.msra.mxu0 0.0
        %250 = vmatprep.subr.mxu0 0.0
        %251 = vmatpush1.msra.mxu0 0.0
        %252 = vmatprep.subr.mxu0 0.0
        %253 = vmatpush1.msra.mxu0 0.0
        %254 = vmatprep.subr.mxu0 0.0
        %255 = vmatpush1.msra.mxu0 0.0
        %256 = vmatprep.subr.mxu0 0.0
        %257 = vmatpush1.msra.mxu0 0.0
        %258 = vmatprep.subr.mxu0 0.0
        %259 = vmatpush1.msra.mxu0 0.0
        %260 = vmatprep.subr.mxu0 0.0
        %261 = vmatpush1.msra.mxu0 0.0
        %262 = vmatprep.subr.mxu0 0.0
        %263 = vmatpush1.msra.mxu0 0.0
        %264 = vmatprep.subr.mxu0 0.0
        %265 = vmatpush1.msra.mxu0 0.0
        %266 = vmatprep.subr.mxu0 0.0
        %267 = vmatpush1.msra.mxu0 0.0
        %268 = vmatprep.subr.mxu0 0.0
        %269 = vmatpush1.msra.mxu0 0.0
        %270 = vmatprep.subr.mxu0 0.0
        %271 = vmatpush1.msra.mxu0 0.0
        %272 = vmatprep.subr.mxu0 0.0
        %273 = vmatpush1.msra.mxu0 0.0
        %274 = vmatprep.subr.mxu0 0.0
        %275 = vmatpush1.msra.mxu0 0.0
        %276 = vmatprep.subr.mxu0 0.0
        %277 = vmatpush1.msra.mxu0 0.0
        %278 = vmatprep.subr.mxu0 0.0
        %279 = vmatpush1.msra.mxu0 0.0
        %280 = vmatprep.subr.mxu0 0.0
        %281 = vmatpush1.msra.mxu0 0.0
        %282 = vmatprep.subr.mxu0 0.0
        %283 = vmatpush1.msra.mxu0 0.0
        %284 = vmatprep.subr.mxu0 0.0
        %285 = vmatpush1.msra.mxu0 0.0
        %286 = vmatprep.subr.mxu0 0.0
        %287 = vmatpush1.msra.mxu0 0.0
        %288 = vmatprep.subr.mxu0 0.0
        %289 = vmatpush1.msra.mxu0 0.0
        %290 = vmatprep.subr.mxu0 0.0
        %291 = vmatpush1.msra.mxu0 0.0
        %292 = vmatprep.subr.mxu0 0.0
        %293 = vmatpush1.msra.mxu0 0.0
        %294 = vmatprep.subr.mxu0 0.0
        %295 = vmatpush1.msra.mxu0 0.0
        %296 = vmatprep.subr.mxu0 0.0
        %297 = vmatpush1.msra.mxu0 0.0
        %298 = vmatprep.mubr.f32.mxu0 0.0
        %299 = vmatmul.mubr.f32.gmra.mrb[0].mxu0 %v229
        %v300 = vpop.f32.mrb[0].mxu0
        %v301 = vadd.f32 %v225, %v300
        %v302 = vpop.f32.mrb[0].mxu0
        %303 = vmatprep.mubr.f32.mxu0 0.0
        %304 = vmatmul.mubr.f32.gmra.mrb[0].mxu0 %v232
        %v305 = vpop.f32.mrb[0].mxu0
        %v306 = vadd.f32 %v225, %v305
        %v307 = vpop.f32.mrb[0].mxu0
        %308 = vdwg.mxu0
        %v309 = vlaneseq
        %v310 = vand.u32 %v309, 127
        %311 = vmax.xlane.f32.xlu0 %v301
        %v312 = vpop.xlane.xlu0 %311
        %313 = vmax.xlane.f32.xlu0 %v306
        %v314 = vpop.xlane.xlu0 %313
        %vm315 = vcmp.eq.f32.partialorder %v301, %v312
        %vm316 = vcmp.eq.f32.partialorder %v306, %v314
        %vm317 = vcmp.lt.s32.totalorder %v310, 2
        %v318 = vsel %vm317, 1, 0
        %vm319 = vcmp.eq.s32.totalorder %v318, 1
        %vm320 = vmand %vm315, %vm319
        %vm321 = vmand %vm316, %vm319
        %v322 = vsel %vm320, %v310, 128
        %v323 = vsel %vm321, %v310, 128
        %v324 = vand.u32 %v322, 65535
        %v325 = vshra.s32 %v322, 16
        %v326 = vcvt.s32.f32 %v324
        %v327 = vcvt.s32.f32 %v325
        %328 = vmin.xlane.f32.xlu0 %v327
        %v329 = vpop.xlane.xlu0 %328
        %vm330 = vcmp.eq.f32.partialorder %v327, %v329
        %v331 = vsel %vm330, %v326, inf
        %332 = vmin.xlane.f32.xlu0 %v331
        %v333 = vpop.xlane.xlu0 %332
        %v334 = vcvt.f32.s32 %v333
        %v335 = vcvt.f32.s32 %v329
        %v336 = vshll.u32 %v335, 16
        %v337 = vadd.s32 %v336, %v334
        %v338 = vand.u32 %v323, 65535
        %v339 = vshra.s32 %v323, 16
        %v340 = vcvt.s32.f32 %v338
        %v341 = vcvt.s32.f32 %v339
        %342 = vmin.xlane.f32.xlu0 %v341
        %v343 = vpop.xlane.xlu0 %342
        %vm344 = vcmp.eq.f32.partialorder %v341, %v343
        %v345 = vsel %vm344, %v340, inf
        %346 = vmin.xlane.f32.xlu0 %v345
        %v347 = vpop.xlane.xlu0 %346
        %v348 = vcvt.f32.s32 %v347
        %v349 = vcvt.f32.s32 %v343
        %v350 = vshll.u32 %v349, 16
        %v351 = vadd.s32 %v350, %v348
        %v352 = vlaneseq
        %v353 = vshrl.u32 %v352, 7
        %v354 = vsub.s32 %v310, %v353
        %v355 = vrot.slane %v337, %v354
        %v356 = vadd.s32 %v310, 4294967288
        %v357 = vlaneseq
        %v358 = vshrl.u32 %v357, 7
        %v359 = vsub.s32 %v356, %v358
        %v360 = vrot.slane %v351, %v359
        %vm361 = vcmask 130112
        %v362 = vsel %vm361, %v360, %v355
        %vm363 = vcmask 122880
        %364 = vst.msk [vmem:[%s208] sm:$0x1] %vm363, %v362
        %s365 = sand.u32 %s97, 1
        %s366 = scalar_lea.sflag [#allocation4], %s365
        %s367 = sand.u32 %s97, 1
        %s368 = scalar_lea.vmem [#allocation7], %s367
        // Predicated region
        $region41: #{tpu_custom_call.1} parent=31 // pred_check
          %p369 = pneg %p107
        $region42: #{tpu_custom_call.1} parent=31 // pred_check_branch
          %371 = sbr.rel (%p369) target = $region44
        $region43: #{tpu_custom_call.1} parent=31 // pred_region
          %s373 = ssub.s32 16, 16
          %374 = vsyncadd %s366, %s373
          %s375 = smul.addr %s21, 16
          %s376 = scalar_lea.hbm %s3, %s375
          %s378 = sshll.u32 %s368, 4
          %s379 = int_to_ptr.vmem [resolvable:$true] %s378
          %381 = dma.vmem_to_hbm [thread:$0]  %s379, 16, %s376, %s366
        $region44: #{tpu_custom_call.1} parent=31 // pred_fallthru
          _
      $region32: #{tpu_custom_call.1} parent=5 // pred_fallthru
        _
      %p382 = scmp.le.s32.totalorder 2, %s16
      // Predicated region
      $region45: #{tpu_custom_call.1} parent=5 // pred_check
        %p383 = pneg %p382
      $region46: #{tpu_custom_call.1} parent=5 // pred_check_branch
        %385 = sbr.rel (%p383) target = $region48
      $region47: #{tpu_custom_call.1} parent=5 // pred_region
        %s386 = ssub.s32 %s16, 2
        // Predicated region
        $region49: #{tpu_custom_call.1} parent=47 // pred_check
          %p387 = pneg %p113
        $region50: #{tpu_custom_call.1} parent=47 // pred_check_branch
          %389 = sbr.rel (%p387) target = $region52
        $region51: #{tpu_custom_call.1} parent=47 // pred_region
          %s390 = sand.u32 %s98, 1
          %s391 = scalar_lea.sflag [#allocation4], %s390
          %s392 = sand.u32 %s98, 1
          %s393 = scalar_lea.vmem [#allocation7], %s392
          %394 = dma.done %s391, 16
        $region52: #{tpu_custom_call.1} parent=47 // pred_fallthru
          _
      $region48: #{tpu_custom_call.1} parent=5 // pred_fallthru
        _
    $region6: #{tpu_custom_call.1} parent=1 // loop_footer
      %s20 = sadd.s32 1, %s16
    $region7: #{tpu_custom_call.1} parent=1 // loop_footer_branch
      %15 = sbr.rel target = $region3
    $region8: #{tpu_custom_call.1} parent=1 // loop_exit
      _
    %395 = vsyncpa [#allocation3], 1
    %s396 = scalar_lea.sflag [#allocation3], 1
    %397 = vsyncpa %s396, 1
    %398 = vsyncpa [#allocation6], 1
    %399 = vsyncpa [#allocation4], 1
    %s400 = scalar_lea.sflag [#allocation4], 1
    %401 = vsyncpa %s400, 1

</llo_original>
